<compile_context>
chip_gen: v6e
topology: v6e:2x2x1
jax: 0.10.0
libtpu: 0.0.40
codegen_flags: <defaults>
</compile_context>

<pallas_src>
import jax
import jax.numpy as jnp
from jax.experimental import pallas as pl
from jax.experimental.pallas import tpu as pltpu


def _round_up(x, m):
    return (x + m - 1) // m * m


def _pnorm_kernel(mean_ref, tstd_ref, out_ref):
    # Parameter blocks: (1, Fp) float32, resident across all grid steps.
    mean = mean_ref[...]
    tstd = tstd_ref[...]

    # PyTorch F.softplus(x) with beta=1, threshold=20:
    #   softplus(x) = log1p(exp(x)) if x <= 20 else x
    # (jnp.minimum guards the dead branch from producing inf.)
    sp = jnp.where(tstd > 20.0,
                   tstd,
                   jnp.log1p(jnp.exp(jnp.minimum(tstd, 20.0))))
    std = 0.01 + sp

    tb = out_ref.shape[1]
    fp = out_ref.shape[2]
    out_ref[0, :, :] = jnp.broadcast_to(mean, (tb, fp)).astype(out_ref.dtype)
    out_ref[1, :, :] = jnp.broadcast_to(std, (tb, fp)).astype(out_ref.dtype)


def pnorm_forward(mean, trans_std, batch_size, *, out_dtype=None,
                  block_batch=None):
    """Returns (mean, std) of the Normal distribution, each (batch_size, F).

    Compute is done in float32; outputs are cast to `out_dtype`
    (default: mean.dtype).
    """
    features = mean.shape[0]
    out_dtype = jnp.dtype(out_dtype) if out_dtype is not None else mean.dtype
    itemsize = jnp.dtype(out_dtype).itemsize

    # Lane-dense feature width.
    fp = _round_up(features, 128)
    mean_p = jnp.pad(mean.astype(jnp.float32), (0, fp - features)).reshape(1, fp)
    tstd_p = jnp.pad(trans_std.astype(jnp.float32), (0, fp - features)).reshape(1, fp)

    # Batch tile: multiple of 8, as large as reasonable, but keep the
    # double-buffered combined output block (2 * TB * Fp * itemsize * 2 bufs)
    # under ~8 MiB so it fits every generation's default scoped VMEM.
    if block_batch is None:
        budget_bytes = 8 * 1024 * 1024
        tb_cap = max(8, (budget_bytes // (4 * itemsize * fp)) // 8 * 8)
        block_batch = min(_round_up(batch_size, 8), 1024, tb_cap)
    tb = block_batch

    b_pad = _round_up(batch_size, tb)
    grid = (b_pad // tb,)

    out = pl.pallas_call(
        _pnorm_kernel,
        out_shape=jax.ShapeDtypeStruct((2, b_pad, fp), out_dtype),
        grid=grid,
        in_specs=[
            # Same block index every step -> parameters stay resident in VMEM.
            pl.BlockSpec((1, fp), lambda i: (0, 0)),
            pl.BlockSpec((1, fp), lambda i: (0, 0)),
        ],
        out_specs=pl.BlockSpec((2, tb, fp), lambda i: (0, i, 0)),
        compiler_params=pltpu.CompilerParams(
            dimension_semantics=("parallel",)),
    )(mean_p, tstd_p)

    mean_out = out[0, :batch_size, :features]
    std_out = out[1, :batch_size, :features]
    return mean_out, std_out


if __name__ == "__main__":
    batch_size = 8
    features = 32

    # Deterministic parameter init (PyTorch module initializes both to zeros;
    # use small random values so the softplus path is non-trivial).
    key = jax.random.PRNGKey(0)
    k_mean, k_std = jax.random.split(key)
    mean_param = jax.random.normal(k_mean, (features,), dtype=jnp.float32)
    trans_std_param = jax.random.normal(k_std, (features,), dtype=jnp.float32)

    mean_out, std_out = pnorm_forward(mean_param, trans_std_param, batch_size)
    jax.block_until_ready((mean_out, std_out))

    # Reference check in plain JAX.
    ref_mean = jnp.broadcast_to(mean_param[None, :], (batch_size, features))
    ref_std = jnp.broadcast_to(
        0.01 + jax.nn.softplus(trans_std_param)[None, :], (batch_size, features)
    )
    assert mean_out.shape == (batch_size, features)
    assert std_out.shape == (batch_size, features)
    assert jnp.allclose(mean_out, ref_mean, atol=1e-6)
    assert jnp.allclose(std_out, ref_std, atol=1e-6)
    assert bool(jnp.all(std_out > 0.0))

    print("KERNEL_OK")
</pallas_src>

<mosaic_0001>
module attributes {stable_mosaic.version = 11 : i64} {
  func.func @_pnorm_kernel(%arg0: i32, %arg1: memref<1x128xf32, #tpu.memory_space<vmem>>, %arg2: memref<1x128xf32, #tpu.memory_space<vmem>>, %arg3: memref<2x8x128xf32, #tpu.memory_space<vmem>>) attributes {dimension_semantics = [#tpu.dimension_semantics<parallel>], iteration_bounds = array<i64: 1>, scalar_prefetch = 0 : i64, scratch_operands = 0 : i64, tpu.core_type = #tpu.core_type<tc>, window_params = [{pipeline_mode = #tpu.pipeline_mode<synchronous>, transform_indices = @transform_0, window_bounds = array<i64: 1, 128>}, {pipeline_mode = #tpu.pipeline_mode<synchronous>, transform_indices = @transform_1, window_bounds = array<i64: 1, 128>}, {transform_indices = @transform_2, window_bounds = array<i64: 2, 8, 128>}]} {
    %c0 = arith.constant 0 : index
    %c0_0 = arith.constant 0 : index
    %0 = vector.load %arg1[%c0, %c0_0] : memref<1x128xf32, #tpu.memory_space<vmem>>, vector<1x128xf32>
    %c0_1 = arith.constant 0 : index
    %c0_2 = arith.constant 0 : index
    %1 = vector.load %arg2[%c0_1, %c0_2] : memref<1x128xf32, #tpu.memory_space<vmem>>, vector<1x128xf32>
    %cst = arith.constant 2.000000e+01 : f32
    %2 = vector.broadcast %cst : f32 to vector<1x128xf32>
    %3 = arith.cmpf ogt, %1, %2 : vector<1x128xf32>
    %cst_3 = arith.constant 2.000000e+01 : f32
    %4 = vector.broadcast %cst_3 : f32 to vector<1x128xf32>
    %5 = arith.minimumf %1, %4 : vector<1x128xf32>
    %6 = math.exp %5 : vector<1x128xf32>
    %7 = math.log1p %6 : vector<1x128xf32>
    %8 = arith.select %3, %1, %7 : vector<1x128xi1>, vector<1x128xf32>
    %cst_4 = arith.constant 0.00999999977 : f32
    %9 = vector.broadcast %cst_4 : f32 to vector<1x128xf32>
    %10 = arith.addf %9, %8 : vector<1x128xf32>
    %11 = vector.shape_cast %0 : vector<1x128xf32> to vector<1x128xf32>
    %12 = vector.broadcast %11 : vector<1x128xf32> to vector<8x128xf32>
    %c0_5 = arith.constant 0 : index
    %c0_6 = arith.constant 0 : index
    %c0_7 = arith.constant 0 : index
    %13 = vector.load %arg3[%c0_5, %c0_6, %c0_7] : memref<2x8x128xf32, #tpu.memory_space<vmem>>, vector<1x8x128xf32>
    %14 = vector.shape_cast %13 : vector<1x8x128xf32> to vector<8x128xf32>
    %15 = vector.shape_cast %12 : vector<8x128xf32> to vector<1x8x128xf32>
    tpu.vector_store %arg3[%c0_5, %c0_6, %c0_7], %15 {strides = array<i32>} : memref<2x8x128xf32, #tpu.memory_space<vmem>>, vector<1x8x128xf32>,
    %16 = vector.shape_cast %10 : vector<1x128xf32> to vector<1x128xf32>
    %17 = vector.broadcast %16 : vector<1x128xf32> to vector<8x128xf32>
    %c1 = arith.constant 1 : index
    %c0_8 = arith.constant 0 : index
    %c0_9 = arith.constant 0 : index
    %18 = vector.load %arg3[%c1, %c0_8, %c0_9] : memref<2x8x128xf32, #tpu.memory_space<vmem>>, vector<1x8x128xf32>
    %19 = vector.shape_cast %18 : vector<1x8x128xf32> to vector<8x128xf32>
    %20 = vector.shape_cast %17 : vector<8x128xf32> to vector<1x8x128xf32>
    tpu.vector_store %arg3[%c1, %c0_8, %c0_9], %20 {strides = array<i32>} : memref<2x8x128xf32, #tpu.memory_space<vmem>>, vector<1x8x128xf32>,
    return
  }
  func.func @transform_0(%arg0: i32) -> (i32, i32) {
    %c0_i32 = arith.constant 0 : i32
    %c0_i32_0 = arith.constant 0 : i32
    %c0_i32_1 = arith.constant 0 : i32
    return %c0_i32, %c0_i32_0 : i32, i32
  }
  func.func @transform_1(%arg0: i32) -> (i32, i32) {
    %c0_i32 = arith.constant 0 : i32
    %c0_i32_0 = arith.constant 0 : i32
    %c0_i32_1 = arith.constant 0 : i32
    return %c0_i32, %c0_i32_0 : i32, i32
  }
  func.func @transform_2(%arg0: i32) -> (i32, i32, i32) {
    %c0_i32 = arith.constant 0 : i32
    %c0_i32_0 = arith.constant 0 : i32
    %c0_i32_1 = arith.constant 0 : i32
    return %c0_i32, %arg0, %c0_i32_0 : i32, i32, i32
  }
}

</mosaic_0001>

<llo_original>
// kernel: tpu_custom_call.1
$region0: #{tpu_custom_call.1}
  #allocation0 [shape = 'u32[]', space=smem, size = 0x4, offset = 0x4, fixed_abs, tag = 'smem constant byte address 0x4 - core index']
  #allocation1 [shape = 'u32[144,128]{1,0:T(1,128)}', space=vmem, size = 0x12000, scoped, tag = 'internal scratch']
  %s0 = inlined_call_operand.hbm [shape: f32[1,128], index: 0, kind: input, shape index: {}]
  %s1 = inlined_call_operand.vmem [shape: f32[1,128], index: 1, kind: input, shape index: {}]
  %s2 = inlined_call_operand.hbm [shape: f32[2,8,128], index: 2, kind: output, shape index: {}]
  %s3 = sld [smem:[#allocation0]]
  $region22: #{tpu_custom_call.1} parent=0
    _
  %s5 = ssub.s32 1, %s3
  %s6 = scalar_select 0, %s5, %s3
  $region1: #{tpu_custom_call.1} parent=0
    #allocation2 [shape = 'u8[512]{0}', space=vmem, size = 0x400, scoped, tag = 'input window, operand 0, single buffered']
    #allocation3 [shape = 's32[1]{0}', space=sflag, size = 0x4, scoped, tag = 'scoped memory for tpu_custom_call.1']
    #allocation4 [shape = 's32[1]{0}', space=sflag, size = 0x4, scoped, tag = 'scoped memory for tpu_custom_call.1']
    #allocation5 [shape = 'u8[8192]{0}', space=vmem, size = 0x2000, scoped, tag = 'output window, operand 0, single buffered']
    %7 = vsyncpa [#allocation3], 0
    %8 = vsyncpa [#allocation4], 0
    // Predicated region
    $region2: #{tpu_custom_call.1} parent=1 // pred_check
      _
    $region3: #{tpu_custom_call.1} parent=1 // pred_check_branch
      %10 = sbr.rel (0) target = $region5
    $region4: #{tpu_custom_call.1} parent=1 // pred_region
      %s12 = ssub.s32 16, 16
      %13 = vsyncadd [#allocation3], %s12
      %s15 = sshll.u32 [#allocation2], 4
      %s16 = int_to_ptr.vmem [resolvable:$true] %s15
      %18 = dma.hbm_to_vmem [thread:$0]  %s0, 16, %s16, [#allocation3]
    $region5: #{tpu_custom_call.1} parent=1 // pred_fallthru
      _
    // Predicated region
    $region6: #{tpu_custom_call.1} parent=1 // pred_check
      _
    $region7: #{tpu_custom_call.1} parent=1 // pred_check_branch
      %20 = sbr.rel (0) target = $region9
    $region8: #{tpu_custom_call.1} parent=1 // pred_region
      _
    $region9: #{tpu_custom_call.1} parent=1 // pred_fallthru
      _
    // Predicated region
    $region10: #{tpu_custom_call.1} parent=1 // pred_check
      _
    $region11: #{tpu_custom_call.1} parent=1 // pred_check_branch
      %22 = sbr.rel (0) target = $region13
    $region12: #{tpu_custom_call.1} parent=1 // pred_region
      %23 = dma.done [#allocation3], 16
    $region13: #{tpu_custom_call.1} parent=1 // pred_fallthru
      _
    %v24 = vld [vmem:[#allocation2] sm:$0x1]
    %v25 = vld [vmem:[%s1] sm:$0x1]
    %vm26 = vcmp.gt.f32.partialorder %v25, 20.0
    %v27 = vmin.f32 %v25, 20.0
    %v28 = vmul.f32 %v27, 1.442695
    %v29 = vpow.pop %v28
    %v30 = vadd.f32 %v29, 1.0
    %v31 = vlog2.pop %v30
    %v32 = vmul.f32 %v31, 0.6931472
    %v33 = vmul.f32 -0.5, %v29
    %v34 = vadd.f32 %v33, 1.0
    %v35 = vmul.f32 %v34, %v29
    %v36 = vand.u32 2147483647, %v29
    %vm37 = vcmp.lt.f32.partialorder %v36, 0.0004427343
    %v38 = vsel %vm37, %v35, %v32
    %v39 = vsel %vm26, %v25, %v38
    %v40 = vadd.f32 %v39, 0.01
    %v42 = vlaneseq
    %v43 = vshrl.u32 %v42, 7
    %v44 = vsub.s32 0, %v43
    %v45 = vrot.slane %v24, %v44
    %47 = vst [vmem:[#allocation5] sm:$0xff] %v45
    %v49 = vlaneseq
    %v50 = vshrl.u32 %v49, 7
    %v51 = vsub.s32 0, %v50
    %v52 = vrot.slane %v40, %v51
    %s54 = scalar_lea.vmem [#allocation5], 8
    %55 = vst [vmem:[%s54] sm:$0xff] %v52
    // Predicated region
    $region14: #{tpu_custom_call.1} parent=1 // pred_check
      _
    $region15: #{tpu_custom_call.1} parent=1 // pred_check_branch
      %57 = sbr.rel (0) target = $region17
    $region16: #{tpu_custom_call.1} parent=1 // pred_region
      %s59 = ssub.s32 256, 256
      %60 = vsyncadd [#allocation4], %s59
      %s61 = sshll.u32 [#allocation5], 4
      %s62 = int_to_ptr.vmem [resolvable:$true] %s61
      %67 = dma.vmem_to_hbm [thread:$0]  %s62, 256, %s2, [#allocation4], 128, 128, 8
    $region17: #{tpu_custom_call.1} parent=1 // pred_fallthru
      _
    // Predicated region
    $region18: #{tpu_custom_call.1} parent=1 // pred_check
      _
    $region19: #{tpu_custom_call.1} parent=1 // pred_check_branch
      %69 = sbr.rel (0) target = $region21
    $region20: #{tpu_custom_call.1} parent=1 // pred_region
      %70 = dma.done [#allocation4], 256
    $region21: #{tpu_custom_call.1} parent=1 // pred_fallthru
      _
    %71 = vsyncpa [#allocation3], 1
    %72 = vsyncpa [#allocation4], 1

</llo_original>
